<compile_context>
chip_gen: v6e
topology: v6e:2x2x1
jax: 0.10.0
libtpu: 0.0.40
codegen_flags: <defaults>
</compile_context>

<pallas_src>
import functools
import math

import jax
import jax.numpy as jnp
import numpy as np
from jax.experimental import pallas as pl
from jax.experimental.pallas import tpu as pltpu

_BIG_CENTER = 1.0e9  # masked-out / padded gaussian centers (already "scaled")


def _gaussian_upsampling_kernel(ym_ref, c_ref, x_ref, o_ref, acc_ref, s_ref,
                                *, tile_f):
    # ym_ref: (1, 1, TILE_F)      y_mask * sqrt(delta), lane-dense
    # c_ref : (1, TILE_K, 1)      centers * sqrt(delta) (masked/padded -> 1e9)
    # x_ref : (1, C, TILE_K)      hidden states (bf16 for the MXU)
    # o_ref : (1, C, TILE_F)      output tile (resident across the k axis)
    # acc_ref: (C, TILE_F) f32    un-normalized output accumulator
    # s_ref : (1, TILE_F) f32     softmax denominator accumulator
    f = pl.program_id(1)
    k = pl.program_id(2)

    @pl.when(k == 0)
    def _init():
        acc_ref[...] = jnp.zeros_like(acc_ref)
        s_ref[...] = jnp.zeros_like(s_ref)

    # Frame coordinates t' = frame * y_mask * sqrt(delta); the sqrt(delta) is
    # folded into ym in the wrapper so this is the same single multiply the
    # masking already required.
    ym = ym_ref[0]                                                 # (1, TILE_F)
    frame = jax.lax.broadcasted_iota(jnp.int32, (1, tile_f), 1) + f * tile_f
    t = frame.astype(jnp.float32) * ym                             # (1, TILE_F)

    c = c_ref[0]                                                   # (TILE_K, 1)
    diff = t - c                                                   # (TILE_K, TILE_F)
    p = jnp.exp(-(diff * diff))                                    # f32, <= 1; masked rows -> 0

    # Denominator stays f32 (computed from the f32 p).
    s_ref[...] = s_ref[...] + jnp.sum(p, axis=0, keepdims=True)

    # MXU contraction with bf16 operands, f32 accumulate.
    xc = x_ref[0]                                                  # (C, TILE_K)
    acc_ref[...] = acc_ref[...] + jax.lax.dot_general(
        xc, p.astype(xc.dtype),
        dimension_numbers=(((1,), (0,)), ((), ())),                # (C,Tk)x(Tk,Tf)->(C,Tf)
        preferred_element_type=jnp.float32,
    )

    @pl.when(k == pl.num_programs(2) - 1)
    def _finalize():
        inv = pl.reciprocal(jnp.maximum(s_ref[...], 1e-30), approx=True)
        o_ref[0] = (acc_ref[...] * inv).astype(o_ref.dtype)        # deferred softmax norm


def _round_up(n, m):
    return ((n + m - 1) // m) * m


def _pick_tile(n, max_tile=512):
    """Largest tile in {512,256,128} that adds no padding beyond 128-alignment."""
    base = _round_up(n, 128)
    for cand in (512, 256, 128):
        if cand <= max_tile and cand <= base and base % cand == 0:
            return cand, base
    return 128, base


def gaussian_upsampling(x, w, x_mask=None, y_mask=None, *, delta=0.1,
                        t_feats=None, tile_f=None, tile_k=None,
                        mxu_dtype=jnp.bfloat16):
    """JAX/Pallas equivalent of GaussianUpsampling.forward.

    x: (B, C, T_text), w: (B, T_text).
    Returns (B, C, T_feats) where T_feats = y_mask.shape[-1] (or `t_feats`).
    """
    B, C, Tt = x.shape
    if y_mask is not None:
        Tf = y_mask.shape[-1]
    else:
        # TODO(synk): PyTorch computes T_feats = int(w.sum()) at runtime (data-
        # dependent shape); in JAX a static T_feats must be supplied instead.
        assert t_feats is not None, "t_feats must be given statically when y_mask is None"
        Tf = int(t_feats)

    # ---- tile selection (minimize padding waste) ----
    if tile_f is None:
        tf_tile, Tf_pad = _pick_tile(Tf)
    else:
        tf_tile = min(_round_up(int(tile_f), 128), _round_up(Tf, 128))
        Tf_pad = _round_up(Tf, tf_tile)
    if tile_k is None:
        tk_tile, Tt_pad = _pick_tile(Tt)
    else:
        tk_tile = min(_round_up(int(tile_k), 128), _round_up(Tt, 128))
        Tt_pad = _round_up(Tt, tk_tile)
    n_f = Tf_pad // tf_tile
    n_k = Tt_pad // tk_tile

    # ---- tiny O(Tt)/O(Tf) glue: centers, masks, sqrt(delta) folding ----
    sqrt_delta = math.sqrt(float(delta))
    w_f = w.astype(jnp.float32)
    c = (jnp.cumsum(w_f, axis=-1) - 0.5 * w_f) * sqrt_delta        # (B, Tt)
    if x_mask is not None:
        c = jnp.where(x_mask.astype(jnp.float32) > 0.5, c, _BIG_CENTER)
    if Tt_pad != Tt:
        c = jnp.pad(c, ((0, 0), (0, Tt_pad - Tt)), constant_values=_BIG_CENTER)

    if y_mask is not None:
        ym = y_mask.astype(jnp.float32)
    else:
        ym = jnp.ones((B, Tf), dtype=jnp.float32)
    ym = ym * sqrt_delta                                           # fold sqrt(delta) into t
    if Tf_pad != Tf:
        ym = jnp.pad(ym, ((0, 0), (0, Tf_pad - Tf)))

    out_dtype = x.dtype
    xq = x.astype(mxu_dtype)                                       # MXU operand only
    if Tt_pad != Tt:
        xq = jnp.pad(xq, ((0, 0), (0, 0), (0, Tt_pad - Tt)))

    c3 = c[:, :, None]                                             # (B, Tt_pad, 1)
    ym3 = ym[:, None, :]                                           # (B, 1, Tf_pad)

    # ---- VMEM budget from actual buffer math (generation-aware cap) ----
    x_bytes = jnp.dtype(mxu_dtype).itemsize
    est = (2 * C * tk_tile * x_bytes                # x blocks (double-buffered)
           + 2 * tk_tile * 128 * 4                  # c blocks (lane-padded (TILE_K,1))
           + 2 * 8 * tf_tile * 4                    # y_mask blocks
           + 2 * C * tf_tile * 4                    # output blocks
           + C * tf_tile * 4                        # acc scratch
           + 8 * tf_tile * 4                        # s scratch
           + tk_tile * tf_tile * (4 + x_bytes))     # p (f32) + bf16 copy
    phys_vmem = 64 * 1024 * 1024                    # conservative (v7x per-TC)
    try:
        info = pltpu.get_tpu_info()
        phys_vmem = int(getattr(info, "vmem_capacity_bytes", phys_vmem)) or phys_vmem
    except Exception:
        pass
    vmem_limit = int(min(max(2 * est, 16 * 1024 * 1024), int(0.75 * phys_vmem)))

    kernel = functools.partial(_gaussian_upsampling_kernel, tile_f=tf_tile)
    out = pl.pallas_call(
        kernel,
        out_shape=jax.ShapeDtypeStruct((B, C, Tf_pad), out_dtype),
        grid=(B, n_f, n_k),
        in_specs=[
            pl.BlockSpec((1, 1, tf_tile), lambda b, f, k: (b, 0, f)),    # y_mask tile
            pl.BlockSpec((1, tk_tile, 1), lambda b, f, k: (b, k, 0)),    # centers chunk
            pl.BlockSpec((1, C, tk_tile), lambda b, f, k: (b, 0, k)),    # x chunk
        ],
        out_specs=pl.BlockSpec((1, C, tf_tile), lambda b, f, k: (b, 0, f)),
        scratch_shapes=[
            pltpu.VMEM((C, tf_tile), jnp.float32),                       # acc
            pltpu.VMEM((1, tf_tile), jnp.float32),                       # denominator
        ],
        compiler_params=pltpu.CompilerParams(
            dimension_semantics=("parallel", "parallel", "arbitrary"),
            vmem_limit_bytes=vmem_limit,
        ),
    )(ym3, c3, xq)
    return out[:, :, :Tf]


def _reference(x, w, x_mask, y_mask, delta):
    """Pure-JAX reference mirroring the PyTorch semantics."""
    B, C, Tt = x.shape
    Tf = y_mask.shape[-1]
    t = jnp.broadcast_to(jnp.arange(Tf, dtype=jnp.float32)[None, :], (B, Tf))
    t = t * y_mask.astype(jnp.float32)
    c = jnp.cumsum(w, axis=-1) - w * 0.5
    energy = -delta * (t[:, :, None] - c[:, None, :]) ** 2
    energy = jnp.where(x_mask[:, None, :] > 0.5, energy, -jnp.inf)
    p_attn = jax.nn.softmax(energy, axis=2)                      # (B, Tf, Tt)
    return jnp.einsum("btk,bck->bct", p_attn, x)


def _make_case(key, B, C, Tt, Tf, text_lens, feat_lens):
    k1, k2 = jax.random.split(key)
    x = jax.random.normal(k1, (B, C, Tt), dtype=jnp.float32)
    w = 1.0 + 2.0 * jax.random.uniform(k2, (B, Tt), dtype=jnp.float32)
    x_mask = (jnp.arange(Tt)[None, :] < jnp.asarray(text_lens)[:, None]).astype(jnp.float32)
    y_mask = (jnp.arange(Tf)[None, :] < jnp.asarray(feat_lens)[:, None]).astype(jnp.float32)
    return x, w, x_mask, y_mask


if __name__ == "__main__":
    key = jax.random.PRNGKey(0)
    k_a, k_b = jax.random.split(key)
    temperature = 0.1
    # bf16 MXU operands -> compare against the f32 reference at a bf16-level tolerance.
    TOL = 2e-2

    # Case 1: small shapes (single T_text chunk, single T_feats tile).
    x, w, xm, ym = _make_case(k_a, B=2, C=8, Tt=16, Tf=40,
                              text_lens=[16, 12], feat_lens=[38, 30])
    out = gaussian_upsampling(x, w, x_mask=xm, y_mask=ym, delta=temperature)
    out = jax.block_until_ready(out)
    ref = _reference(x, w, xm, ym, temperature)
    np.testing.assert_allclose(np.asarray(out), np.asarray(ref), rtol=TOL, atol=TOL)

    # Case 2: exercises the T_text reduction axis (n_k > 1) and multiple
    # T_feats tiles (n_f > 1).
    x2, w2, xm2, ym2 = _make_case(k_b, B=2, C=4, Tt=520, Tf=300,
                                  text_lens=[520, 400], feat_lens=[300, 250])
    out2 = gaussian_upsampling(x2, w2, x_mask=xm2, y_mask=ym2, delta=temperature)
    out2 = jax.block_until_ready(out2)
    ref2 = _reference(x2, w2, xm2, ym2, temperature)
    np.testing.assert_allclose(np.asarray(out2), np.asarray(ref2), rtol=TOL, atol=TOL)

    print("KERNEL_OK")
</pallas_src>

<mosaic_0001>
module attributes {stable_mosaic.version = 11 : i64} {
  func.func @_gaussian_upsampling_kernel(%arg0: i32, %arg1: i32, %arg2: i32, %arg3: memref<1x1x128xf32, #tpu.memory_space<vmem>>, %arg4: memref<1x128x1xf32, #tpu.memory_space<vmem>>, %arg5: memref<1x8x128xbf16, #tpu.memory_space<vmem>>, %arg6: memref<1x8x128xf32, #tpu.memory_space<vmem>>, %arg7: memref<8x128xf32, #tpu.memory_space<vmem>>, %arg8: memref<1x128xf32, #tpu.memory_space<vmem>>) attributes {dimension_semantics = [#tpu.dimension_semantics<parallel>, #tpu.dimension_semantics<parallel>, #tpu.dimension_semantics<arbitrary>], iteration_bounds = array<i64: 2, 1, 1>, scalar_prefetch = 0 : i64, scratch_operands = 2 : i64, tpu.core_type = #tpu.core_type<tc>, window_params = [{transform_indices = @transform_0, window_bounds = array<i64: 1, 1, 128>}, {transform_indices = @transform_1, window_bounds = array<i64: 1, 128, 1>}, {transform_indices = @transform_2, window_bounds = array<i64: 1, 8, 128>}, {transform_indices = @transform_3, window_bounds = array<i64: 1, 8, 128>}]} {
    %c0_i32 = arith.constant 0 : i32
    %0 = arith.cmpi eq, %arg2, %c0_i32 : i32
    %1 = arith.extui %0 : i1 to i32
    %c0_i32_0 = arith.constant 0 : i32
    %2 = arith.cmpi ne, %1, %c0_i32_0 : i32
    scf.if %2 {
      %cst_21 = arith.constant 0.000000e+00 : f32
      %35 = vector.broadcast %cst_21 : f32 to vector<8x128xf32>
      %c0_22 = arith.constant 0 : index
      %c0_23 = arith.constant 0 : index
      %36 = vector.load %arg7[%c0_22, %c0_23] : memref<8x128xf32, #tpu.memory_space<vmem>>, vector<8x128xf32>
      tpu.vector_store %arg7[%c0_22, %c0_23], %35 {strides = array<i32>} : memref<8x128xf32, #tpu.memory_space<vmem>>, vector<8x128xf32>,
      %cst_24 = arith.constant 0.000000e+00 : f32
      %37 = vector.broadcast %cst_24 : f32 to vector<1x128xf32>
      %c0_25 = arith.constant 0 : index
      %c0_26 = arith.constant 0 : index
      %38 = vector.load %arg8[%c0_25, %c0_26] : memref<1x128xf32, #tpu.memory_space<vmem>>, vector<1x128xf32>
      tpu.vector_store %arg8[%c0_25, %c0_26], %37 {strides = array<i32>} : memref<1x128xf32, #tpu.memory_space<vmem>>, vector<1x128xf32>,
    } else {
    }
    %c0 = arith.constant 0 : index
    %c0_1 = arith.constant 0 : index
    %c0_2 = arith.constant 0 : index
    %3 = vector.load %arg3[%c0, %c0_1, %c0_2] : memref<1x1x128xf32, #tpu.memory_space<vmem>>, vector<1x1x128xf32>
    %4 = vector.shape_cast %3 : vector<1x1x128xf32> to vector<1x128xf32>
    %5 = tpu.iota {dimensions = array<i32: 1>} : vector<1x128xi32>
    %c128_i32 = arith.constant 128 : i32
    %6 = arith.muli %arg1, %c128_i32 : i32
    %7 = vector.broadcast %6 : i32 to vector<1x128xi32>
    %8 = arith.addi %5, %7 : vector<1x128xi32>
    %9 = arith.sitofp %8 : vector<1x128xi32> to vector<1x128xf32>
    %10 = arith.mulf %9, %4 : vector<1x128xf32>
    %c0_3 = arith.constant 0 : index
    %c0_4 = arith.constant 0 : index
    %c0_5 = arith.constant 0 : index
    %11 = vector.load %arg4[%c0_3, %c0_4, %c0_5] : memref<1x128x1xf32, #tpu.memory_space<vmem>>, vector<1x128x1xf32>
    %12 = vector.shape_cast %11 : vector<1x128x1xf32> to vector<128x1xf32>
    %13 = vector.broadcast %10 : vector<1x128xf32> to vector<128x128xf32>
    %14 = vector.broadcast %12 : vector<128x1xf32> to vector<128x128xf32>
    %15 = arith.subf %13, %14 : vector<128x128xf32>
    %16 = arith.mulf %15, %15 : vector<128x128xf32>
    %cst = arith.constant 0.000000e+00 : f32
    %17 = vector.broadcast %cst : f32 to vector<128x128xf32>
    %18 = arith.subf %17, %16 : vector<128x128xf32>
    %19 = math.exp %18 : vector<128x128xf32>
    %c0_6 = arith.constant 0 : index
    %c0_7 = arith.constant 0 : index
    %20 = vector.load %arg8[%c0_6, %c0_7] : memref<1x128xf32, #tpu.memory_space<vmem>>, vector<1x128xf32>
    %cst_8 = arith.constant dense<0.000000e+00> : vector<128xf32>
    %21 = vector.multi_reduction <add>, %19, %cst_8 [0] : vector<128x128xf32> to vector<128xf32>
    %22 = vector.shape_cast %21 : vector<128xf32> to vector<1x128xf32>
    %23 = arith.addf %20, %22 : vector<1x128xf32>
    %c0_9 = arith.constant 0 : index
    %c0_10 = arith.constant 0 : index
    %24 = vector.load %arg8[%c0_9, %c0_10] : memref<1x128xf32, #tpu.memory_space<vmem>>, vector<1x128xf32>
    tpu.vector_store %arg8[%c0_9, %c0_10], %23 {strides = array<i32>} : memref<1x128xf32, #tpu.memory_space<vmem>>, vector<1x128xf32>,
    %c0_11 = arith.constant 0 : index
    %c0_12 = arith.constant 0 : index
    %c0_13 = arith.constant 0 : index
    %25 = vector.load %arg5[%c0_11, %c0_12, %c0_13] : memref<1x8x128xbf16, #tpu.memory_space<vmem>>, vector<1x8x128xbf16>
    %26 = vector.shape_cast %25 : vector<1x8x128xbf16> to vector<8x128xbf16>
    %c0_14 = arith.constant 0 : index
    %c0_15 = arith.constant 0 : index
    %27 = vector.load %arg7[%c0_14, %c0_15] : memref<8x128xf32, #tpu.memory_space<vmem>>, vector<8x128xf32>
    %28 = arith.truncf %19 : vector<128x128xf32> to vector<128x128xbf16>
    %cst_16 = arith.constant dense<0.000000e+00> : vector<8x128xf32>
    %29 = tpu.matmul %26, %28, %cst_16 {dimension_numbers = #tpu.dot_dimension_numbers<[1], [0], [0], [1], [0, 0, 1, 1], [], []>} : vector<8x128xbf16>, vector<128x128xbf16>, vector<8x128xf32> -> vector<8x128xf32>
    %30 = arith.addf %27, %29 : vector<8x128xf32>
    %c0_17 = arith.constant 0 : index
    %c0_18 = arith.constant 0 : index
    %31 = vector.load %arg7[%c0_17, %c0_18] : memref<8x128xf32, #tpu.memory_space<vmem>>, vector<8x128xf32>
    tpu.vector_store %arg7[%c0_17, %c0_18], %30 {strides = array<i32>} : memref<8x128xf32, #tpu.memory_space<vmem>>, vector<8x128xf32>,
    %c0_i32_19 = arith.constant 0 : i32
    %32 = arith.cmpi eq, %arg2, %c0_i32_19 : i32
    %33 = arith.extui %32 : i1 to i32
    %c0_i32_20 = arith.constant 0 : i32
    %34 = arith.cmpi ne, %33, %c0_i32_20 : i32
    scf.if %34 {
      %c0_21 = arith.constant 0 : index
      %c0_22 = arith.constant 0 : index
      %35 = vector.load %arg8[%c0_21, %c0_22] : memref<1x128xf32, #tpu.memory_space<vmem>>, vector<1x128xf32>
      %cst_23 = arith.constant 1.000000e-30 : f32
      %36 = vector.broadcast %cst_23 : f32 to vector<1x128xf32>
      %37 = arith.maximumf %35, %36 : vector<1x128xf32>
      %38 = tpu.reciprocal %37 {approx = true} : vector<1x128xf32> -> vector<1x128xf32>
      %c0_24 = arith.constant 0 : index
      %c0_25 = arith.constant 0 : index
      %39 = vector.load %arg7[%c0_24, %c0_25] : memref<8x128xf32, #tpu.memory_space<vmem>>, vector<8x128xf32>
      %40 = vector.broadcast %38 : vector<1x128xf32> to vector<8x128xf32>
      %41 = arith.mulf %39, %40 : vector<8x128xf32>
      %c0_26 = arith.constant 0 : index
      %c0_27 = arith.constant 0 : index
      %c0_28 = arith.constant 0 : index
      %42 = vector.load %arg6[%c0_26, %c0_27, %c0_28] : memref<1x8x128xf32, #tpu.memory_space<vmem>>, vector<1x8x128xf32>
      %43 = vector.shape_cast %42 : vector<1x8x128xf32> to vector<8x128xf32>
      %44 = vector.shape_cast %41 : vector<8x128xf32> to vector<1x8x128xf32>
      tpu.vector_store %arg6[%c0_26, %c0_27, %c0_28], %44 {strides = array<i32>} : memref<1x8x128xf32, #tpu.memory_space<vmem>>, vector<1x8x128xf32>,
    } else {
    }
    return
  }
  func.func @transform_0(%arg0: i32, %arg1: i32, %arg2: i32) -> (i32, i32, i32) {
    %c0_i32 = arith.constant 0 : i32
    %c0_i32_0 = arith.constant 0 : i32
    return %arg0, %c0_i32, %arg1 : i32, i32, i32
  }
  func.func @transform_1(%arg0: i32, %arg1: i32, %arg2: i32) -> (i32, i32, i32) {
    %c0_i32 = arith.constant 0 : i32
    %c0_i32_0 = arith.constant 0 : i32
    return %arg0, %arg2, %c0_i32 : i32, i32, i32
  }
  func.func @transform_2(%arg0: i32, %arg1: i32, %arg2: i32) -> (i32, i32, i32) {
    %c0_i32 = arith.constant 0 : i32
    %c0_i32_0 = arith.constant 0 : i32
    return %arg0, %c0_i32, %arg2 : i32, i32, i32
  }
  func.func @transform_3(%arg0: i32, %arg1: i32, %arg2: i32) -> (i32, i32, i32) {
    %c0_i32 = arith.constant 0 : i32
    %c0_i32_0 = arith.constant 0 : i32
    return %arg0, %c0_i32, %arg1 : i32, i32, i32
  }
}

</mosaic_0001>

<llo_original>
// kernel: tpu_custom_call.1
$region0: #{tpu_custom_call.1}
  #allocation0 [shape = 'u32[]', space=smem, size = 0x4, offset = 0x4, fixed_abs, tag = 'smem constant byte address 0x4 - core index']
  #allocation1 [shape = 'u32[144,128]{1,0:T(1,128)}', space=vmem, size = 0x12000, scoped, tag = 'internal scratch']
  #allocation2 [shape = 'f32[8,128]{1,0:T(8,128)}', space=vmem, size = 0x1000, scoped, tag = 'scratch operand']
  #allocation3 [shape = 'f32[1,128]{1,0:T(1,128)}', space=vmem, size = 0x200, scoped, tag = 'scratch operand']
  %s0 = inlined_call_operand.vmem [shape: f32[2,1,128], index: 0, kind: input, shape index: {}]
  %s1 = inlined_call_operand.vmem [shape: f32[2,128,1], index: 1, kind: input, shape index: {}]
  %s2 = inlined_call_operand.vmem [shape: bf16[2,8,128], index: 2, kind: input, shape index: {}]
  %s3 = inlined_call_operand.hbm [shape: f32[2,8,128], index: 3, kind: output, shape index: {}]
  %s4 = sld [smem:[#allocation0]]
  $region53: #{tpu_custom_call.1} parent=0
    _
  %s6 = ssub.s32 1, %s4
  %s7 = scalar_select 0, %s6, %s4
  $region1: #{tpu_custom_call.1} parent=0
    #allocation4 [shape = 'u8[8192]{0}', space=vmem, size = 0x2000, scoped, tag = 'output window, operand 0']
    #allocation5 [shape = 's32[2]{0}', space=sflag, size = 0x8, scoped, tag = 'scoped memory for tpu_custom_call.1']
    %8 = vsyncpa [#allocation5], 0
    %s9 = scalar_lea.sflag [#allocation5], 1
    %10 = vsyncpa %s9, 0
    loop: start=0, step=1, limit=4
    $region2: #{tpu_custom_call.1} parent=1 // loop_pre_header
      _
    $region3: #{tpu_custom_call.1} parent=1 // loop_header
      %s12 = sphi 0, %s16
      %p13 = scmp.ge.s32.totalorder %s12, 4
      %s19 = sphi 0, %s38
      %s20 = sphi 0, %s34
      %s21 = sphi 0, %s30
      %s22 = sphi 0, %s19
      %s23 = sphi 0, %s20
      %s24 = sphi 0, %s21
      %s25 = sphi 0, %s22
      %s26 = sphi 0, %s23
      %s27 = sphi 0, %s24
      %s43 = sphi 0, %s45
      %s46 = sphi 0, %s43
      %s47 = sphi 0, %s46
      %s63 = sphi 0, %s47
      %s71 = sphi 0, %s73
      %s74 = sphi 0, %s71
      %s75 = sphi 0, %s74
      %s91 = sphi 0, %s75
      %s99 = sphi 0, %s101
      %s102 = sphi 0, %s99
      %s103 = sphi 0, %s102
      %s119 = sphi 0, %s103
      %s127 = sphi 0, %s129
      %s130 = sphi 0, %s127
      %s131 = sphi 0, %s130
      %s147 = sphi 0, %s131
    $region4: #{tpu_custom_call.1} parent=1 // loop_header_branch
      %15 = sbr.rel (%p13) target = $region8
    $region5: #{tpu_custom_call.1} parent=1 // loop_body
      %s17 = ssub.s32 %s12, 1
      %s18 = ssub.s32 %s12, 2
      %s28 = sadd.s32 1, %s21
      %p29 = scmp.ge.s32.totalorder %s28, 1
      %s30 = scalar_select %p29, 0, %s28
      %s31 = sadd.s32 1, %s20
      %s32 = scalar_select %p29, %s31, %s20
      %p33 = scmp.ge.s32.totalorder %s32, 1
      %s34 = scalar_select %p33, 0, %s32
      %s35 = sadd.s32 1, %s19
      %s36 = scalar_select %p33, %s35, %s19
      %p37 = scmp.ge.s32.totalorder %s36, 2
      %s38 = scalar_select %p37, 0, %s36
      %s39 = ssub.s32 %s19, %s38
      %s40 = ssub.s32 %s20, %s34
      %s41 = sor.u32 %s39, %s40
      %p42 = scmp.eq.s32.totalorder %s41, 0
      %s44 = sadd.s32 %s43, 1
      %s45 = scalar_select %p42, %s43, %s44
      %p48 = pneg %p42
      %p49 = scmp.eq.s32.totalorder %s12, 1
      %p50 = por %p48, %p49
      %p51 = scmp.ne.s32.totalorder %s43, %s46
      %p52 = scmp.eq.s32.totalorder %s12, 0
      %p53 = por %p51, %p52
      %p54 = scmp.ne.s32.totalorder %s43, %s46
      %p55 = scmp.eq.s32.totalorder %s17, 1
      %p56 = por %p54, %p55
      %p57 = scmp.ne.s32.totalorder %s46, %s47
      %p58 = scmp.eq.s32.totalorder %s17, 0
      %p59 = por %p57, %p58
      %p60 = scmp.ne.s32.totalorder %s46, %s47
      %p61 = scmp.eq.s32.totalorder %s18, 1
      %p62 = por %p60, %p61
      %p64 = scmp.ne.s32.totalorder %s47, %s63
      %p65 = scmp.eq.s32.totalorder %s18, 0
      %p66 = por %p64, %p65
      %s67 = ssub.s32 %s19, %s38
      %s68 = ssub.s32 %s21, %s30
      %s69 = sor.u32 %s67, %s68
      %p70 = scmp.eq.s32.totalorder %s69, 0
      %s72 = sadd.s32 %s71, 1
      %s73 = scalar_select %p70, %s71, %s72
      %p76 = pneg %p70
      %p77 = scmp.eq.s32.totalorder %s12, 1
      %p78 = por %p76, %p77
      %p79 = scmp.ne.s32.totalorder %s71, %s74
      %p80 = scmp.eq.s32.totalorder %s12, 0
      %p81 = por %p79, %p80
      %p82 = scmp.ne.s32.totalorder %s71, %s74
      %p83 = scmp.eq.s32.totalorder %s17, 1
      %p84 = por %p82, %p83
      %p85 = scmp.ne.s32.totalorder %s74, %s75
      %p86 = scmp.eq.s32.totalorder %s17, 0
      %p87 = por %p85, %p86
      %p88 = scmp.ne.s32.totalorder %s74, %s75
      %p89 = scmp.eq.s32.totalorder %s18, 1
      %p90 = por %p88, %p89
      %p92 = scmp.ne.s32.totalorder %s75, %s91
      %p93 = scmp.eq.s32.totalorder %s18, 0
      %p94 = por %p92, %p93
      %s95 = ssub.s32 %s19, %s38
      %s96 = ssub.s32 %s21, %s30
      %s97 = sor.u32 %s95, %s96
      %p98 = scmp.eq.s32.totalorder %s97, 0
      %s100 = sadd.s32 %s99, 1
      %s101 = scalar_select %p98, %s99, %s100
      %p104 = pneg %p98
      %p105 = scmp.eq.s32.totalorder %s12, 1
      %p106 = por %p104, %p105
      %p107 = scmp.ne.s32.totalorder %s99, %s102
      %p108 = scmp.eq.s32.totalorder %s12, 0
      %p109 = por %p107, %p108
      %p110 = scmp.ne.s32.totalorder %s99, %s102
      %p111 = scmp.eq.s32.totalorder %s17, 1
      %p112 = por %p110, %p111
      %p113 = scmp.ne.s32.totalorder %s102, %s103
      %p114 = scmp.eq.s32.totalorder %s17, 0
      %p115 = por %p113, %p114
      %p116 = scmp.ne.s32.totalorder %s102, %s103
      %p117 = scmp.eq.s32.totalorder %s18, 1
      %p118 = por %p116, %p117
      %p120 = scmp.ne.s32.totalorder %s103, %s119
      %p121 = scmp.eq.s32.totalorder %s18, 0
      %p122 = por %p120, %p121
      %s123 = ssub.s32 %s19, %s38
      %s124 = ssub.s32 %s20, %s34
      %s125 = sor.u32 %s123, %s124
      %p126 = scmp.eq.s32.totalorder %s125, 0
      %s128 = sadd.s32 %s127, 1
      %s129 = scalar_select %p126, %s127, %s128
      %p132 = pneg %p126
      %p133 = scmp.eq.s32.totalorder %s12, 1
      %p134 = por %p132, %p133
      %p135 = scmp.ne.s32.totalorder %s127, %s130
      %p136 = scmp.eq.s32.totalorder %s12, 0
      %p137 = por %p135, %p136
      %p138 = scmp.ne.s32.totalorder %s127, %s130
      %p139 = scmp.eq.s32.totalorder %s17, 1
      %p140 = por %p138, %p139
      %p141 = scmp.ne.s32.totalorder %s130, %s131
      %p142 = scmp.eq.s32.totalorder %s17, 0
      %p143 = por %p141, %p142
      %p144 = scmp.ne.s32.totalorder %s130, %s131
      %p145 = scmp.eq.s32.totalorder %s18, 1
      %p146 = por %p144, %p145
      %p148 = scmp.ne.s32.totalorder %s131, %s147
      %p149 = scmp.eq.s32.totalorder %s18, 0
      %p150 = por %p148, %p149
      %p151 = scmp.le.s32.totalorder 1, %s12
      %p152 = scmp.lt.s32.totalorder %s12, 3
      %p153 = pnand %p151, %p152
      %p154 = pneg %p153
      // Predicated region
      $region9: #{tpu_custom_call.1} parent=5 // pred_check
        _
      $region10: #{tpu_custom_call.1} parent=5 // pred_check_branch
        %156 = sbr.rel (%p153) target = $region12
      $region11: #{tpu_custom_call.1} parent=5 // pred_region
        %s157 = ssub.s32 %s12, 1
      $region12: #{tpu_custom_call.1} parent=5 // pred_fallthru
        _
      %p158 = scmp.lt.s32.totalorder %s12, 2
      // Predicated region
      $region13: #{tpu_custom_call.1} parent=5 // pred_check
        %p159 = pneg %p158
      $region14: #{tpu_custom_call.1} parent=5 // pred_check_branch
        %161 = sbr.rel (%p159) target = $region16
      $region15: #{tpu_custom_call.1} parent=5 // pred_region
        // Predicated region
        $region17: #{tpu_custom_call.1} parent=15 // pred_check
          %p162 = pneg %p53
        $region18: #{tpu_custom_call.1} parent=15 // pred_check_branch
          %164 = sbr.rel (%p162) target = $region20
        $region19: #{tpu_custom_call.1} parent=15 // pred_region
          %p165 = scmp.lt.s32.totalorder %s19, 1
          %s166 = scalar_select %p165, %s19, 1
          %p167 = scmp.lt.s32.totalorder %s20, 0
          %s168 = scalar_select %p167, %s20, 0
          %s169 = sadd.s32 %s168, %s166
          %s170 = scalar_lea.vmem %s0, %s169
        $region20: #{tpu_custom_call.1} parent=15 // pred_fallthru
          _
        // Predicated region
        $region21: #{tpu_custom_call.1} parent=15 // pred_check
          %p171 = pneg %p81
        $region22: #{tpu_custom_call.1} parent=15 // pred_check_branch
          %173 = sbr.rel (%p171) target = $region24
        $region23: #{tpu_custom_call.1} parent=15 // pred_region
          %s174 = smul.u32 16, %s21
          %p175 = scmp.lt.s32.totalorder %s19, 1
          %s176 = scalar_select %p175, %s19, 1
          %p177 = scmp.lt.s32.totalorder %s174, 15
          %s178 = scalar_select %p177, %s174, 15
          %s179 = smul.addr %s176, 16
          %s180 = sadd.s32 %s178, %s179
          %s181 = smul.addr %s180, 8
          %s182 = scalar_lea.vmem %s1, %s181
          %s183 = smul.u32 16, %s21
        $region24: #{tpu_custom_call.1} parent=15 // pred_fallthru
          _
        // Predicated region
        $region25: #{tpu_custom_call.1} parent=15 // pred_check
          %p184 = pneg %p109
        $region26: #{tpu_custom_call.1} parent=15 // pred_check_branch
          %186 = sbr.rel (%p184) target = $region28
        $region27: #{tpu_custom_call.1} parent=15 // pred_region
          %p187 = scmp.lt.s32.totalorder %s19, 1
          %s188 = scalar_select %p187, %s19, 1
          %p189 = scmp.lt.s32.totalorder %s21, 0
          %s190 = scalar_select %p189, %s21, 0
          %s191 = sadd.s32 %s190, %s188
          %s192 = smul.addr %s191, 4
          %s193 = scalar_lea.vmem %s2, %s192
        $region28: #{tpu_custom_call.1} parent=15 // pred_fallthru
          _
      $region16: #{tpu_custom_call.1} parent=5 // pred_fallthru
        _
      %p194 = scmp.le.s32.totalorder 1, %s12
      %p195 = scmp.lt.s32.totalorder %s12, 3
      %p196 = pnand %p194, %p195
      %p197 = pneg %p196
      // Predicated region
      $region29: #{tpu_custom_call.1} parent=5 // pred_check
        _
      $region30: #{tpu_custom_call.1} parent=5 // pred_check_branch
        %199 = sbr.rel (%p196) target = $region32
      $region31: #{tpu_custom_call.1} parent=5 // pred_region
        %s200 = ssub.s32 %s12, 1
        %p201 = scmp.lt.s32.totalorder %s22, 1
        %s202 = scalar_select %p201, %s22, 1
        %p203 = scmp.lt.s32.totalorder %s23, 0
        %s204 = scalar_select %p203, %s23, 0
        %s205 = sadd.s32 %s204, %s202
        %s206 = scalar_lea.vmem %s0, %s205
        %p207 = pneg %p59
        %p208 = pneg %p56
        %s209 = smul.u32 16, %s24
        %p210 = scmp.lt.s32.totalorder %s22, 1
        %s211 = scalar_select %p210, %s22, 1
        %p212 = scmp.lt.s32.totalorder %s209, 15
        %s213 = scalar_select %p212, %s209, 15
        %s214 = smul.addr %s211, 16
        %s215 = sadd.s32 %s213, %s214
        %s216 = smul.addr %s215, 8
        %s217 = scalar_lea.vmem %s1, %s216
        %p218 = pneg %p87
        %p219 = pneg %p84
        %p220 = scmp.lt.s32.totalorder %s22, 1
        %s221 = scalar_select %p220, %s22, 1
        %p222 = scmp.lt.s32.totalorder %s24, 0
        %s223 = scalar_select %p222, %s24, 0
        %s224 = sadd.s32 %s223, %s221
        %s225 = smul.addr %s224, 4
        %s226 = scalar_lea.vmem %s2, %s225
        %p227 = pneg %p115
        %p228 = pneg %p112
        %p229 = pneg %p143
        %p230 = pneg %p140
        %s231 = sand.u32 %s130, 1
        %s232 = scalar_lea.sflag [#allocation5], %s231
        %s233 = sand.u32 %s130, 1
        %s234 = smul.addr %s233, 8
        %s235 = scalar_lea.vmem [#allocation4], %s234
        %p236 = scmp.lt.s32.totalorder %s22, 1
        %s237 = scalar_select %p236, %s22, 1
        %p238 = scmp.lt.s32.totalorder %s23, 0
        %s239 = scalar_select %p238, %s23, 0
        %s240 = sadd.s32 %s239, %s237
        %s241 = scalar_lea.vmem %s0, %s240
        %s242 = smul.u32 16, %s24
        %p243 = scmp.lt.s32.totalorder %s22, 1
        %s244 = scalar_select %p243, %s22, 1
        %p245 = scmp.lt.s32.totalorder %s242, 15
        %s246 = scalar_select %p245, %s242, 15
        %s247 = smul.addr %s244, 16
        %s248 = sadd.s32 %s246, %s247
        %s249 = smul.addr %s248, 8
        %s250 = scalar_lea.vmem %s1, %s249
        %s251 = smul.u32 16, %s24
        %p252 = scmp.lt.s32.totalorder %s22, 1
        %s253 = scalar_select %p252, %s22, 1
        %p254 = scmp.lt.s32.totalorder %s24, 0
        %s255 = scalar_select %p254, %s24, 0
        %s256 = sadd.s32 %s255, %s253
        %s257 = smul.addr %s256, 4
        %s258 = scalar_lea.vmem %s2, %s257
        %p260 = scmp.eq.s32.totalorder %s24, 0
        // Predicated region
        $region33: #{tpu_custom_call.1} parent=31 // pred_check
          %p261 = pneg %p260
        $region34: #{tpu_custom_call.1} parent=31 // pred_check_branch
          %263 = sbr.rel (%p261) target = $region36
        $region35: #{tpu_custom_call.1} parent=31 // pred_region
          %264 = vst [vmem:[#allocation2] sm:$0xff] 0.0
          %265 = vst [vmem:[#allocation3] sm:$0x1] 0.0
        $region36: #{tpu_custom_call.1} parent=31 // pred_fallthru
          _
        %v266 = vld [vmem:[%s241] sm:$0x1]
        %v267 = vlaneseq
        %v268 = vand.u32 %v267, 127
        %s269 = smul.u32 %s23, 128
        %v270 = vstv %s269
        %v271 = vadd.s32 %v268, %v270
        %v272 = vcvt.s32.f32 %v271
        %v273 = vmul.f32 %v272, %v266
        %v274 = vld [vmem:[%s250] sm:$0xff]
        %v275 = vld [vmem:[%s250 + $0x8] sm:$0xff]
        %v276 = vld [vmem:[%s250 + $0x10] sm:$0xff]
        %v277 = vld [vmem:[%s250 + $0x18] sm:$0xff]
        %v278 = vld [vmem:[%s250 + $0x20] sm:$0xff]
        %v279 = vld [vmem:[%s250 + $0x28] sm:$0xff]
        %v280 = vld [vmem:[%s250 + $0x30] sm:$0xff]
        %v281 = vld [vmem:[%s250 + $0x38] sm:$0xff]
        %v282 = vld [vmem:[%s250 + $0x40] sm:$0xff]
        %v283 = vld [vmem:[%s250 + $0x48] sm:$0xff]
        %v284 = vld [vmem:[%s250 + $0x50] sm:$0xff]
        %v285 = vld [vmem:[%s250 + $0x58] sm:$0xff]
        %v286 = vld [vmem:[%s250 + $0x60] sm:$0xff]
        %v287 = vld [vmem:[%s250 + $0x68] sm:$0xff]
        %v288 = vld [vmem:[%s250 + $0x70] sm:$0xff]
        %v289 = vld [vmem:[%s250 + $0x78] sm:$0xff]
        %v290 = vlaneseq
        %v291 = vshrl.u32 %v290, 7
        %v292 = vsub.s32 0, %v291
        %v293 = vrot.slane %v273, %v292
        %295 = vset.pattern.permute.xlu0 0
        %296 = vperm.xlu0 %295, %v274
        %v297 = vpop.permute.xlu0 %296
        %300 = vset.pattern.permute.xlu0 0
        %301 = vperm.xlu0 %300, %v275
        %v302 = vpop.permute.xlu0 %301
        %305 = vset.pattern.permute.xlu0 0
        %306 = vperm.xlu0 %305, %v276
        %v307 = vpop.permute.xlu0 %306
        %310 = vset.pattern.permute.xlu0 0
        %311 = vperm.xlu0 %310, %v277
        %v312 = vpop.permute.xlu0 %311
        %315 = vset.pattern.permute.xlu0 0
        %316 = vperm.xlu0 %315, %v278
        %v317 = vpop.permute.xlu0 %316
        %320 = vset.pattern.permute.xlu0 0
        %321 = vperm.xlu0 %320, %v279
        %v322 = vpop.permute.xlu0 %321
        %325 = vset.pattern.permute.xlu0 0
        %326 = vperm.xlu0 %325, %v280
        %v327 = vpop.permute.xlu0 %326
        %330 = vset.pattern.permute.xlu0 0
        %331 = vperm.xlu0 %330, %v281
        %v332 = vpop.permute.xlu0 %331
        %335 = vset.pattern.permute.xlu0 0
        %336 = vperm.xlu0 %335, %v282
        %v337 = vpop.permute.xlu0 %336
        %340 = vset.pattern.permute.xlu0 0
        %341 = vperm.xlu0 %340, %v283
        %v342 = vpop.permute.xlu0 %341
        %345 = vset.pattern.permute.xlu0 0
        %346 = vperm.xlu0 %345, %v284
        %v347 = vpop.permute.xlu0 %346
        %350 = vset.pattern.permute.xlu0 0
        %351 = vperm.xlu0 %350, %v285
        %v352 = vpop.permute.xlu0 %351
        %355 = vset.pattern.permute.xlu0 0
        %356 = vperm.xlu0 %355, %v286
        %v357 = vpop.permute.xlu0 %356
        %360 = vset.pattern.permute.xlu0 0
        %361 = vperm.xlu0 %360, %v287
        %v362 = vpop.permute.xlu0 %361
        %365 = vset.pattern.permute.xlu0 0
        %366 = vperm.xlu0 %365, %v288
        %v367 = vpop.permute.xlu0 %366
        %370 = vset.pattern.permute.xlu0 0
        %371 = vperm.xlu0 %370, %v289
        %v372 = vpop.permute.xlu0 %371
        %v374 = vsub.f32 %v293, %v297
        %v375 = vsub.f32 %v293, %v302
        %v376 = vsub.f32 %v293, %v307
        %v377 = vsub.f32 %v293, %v312
        %v378 = vsub.f32 %v293, %v317
        %v379 = vsub.f32 %v293, %v322
        %v380 = vsub.f32 %v293, %v327
        %v381 = vsub.f32 %v293, %v332
        %v382 = vsub.f32 %v293, %v337
        %v383 = vsub.f32 %v293, %v342
        %v384 = vsub.f32 %v293, %v347
        %v385 = vsub.f32 %v293, %v352
        %v386 = vsub.f32 %v293, %v357
        %v387 = vsub.f32 %v293, %v362
        %v388 = vsub.f32 %v293, %v367
        %v389 = vsub.f32 %v293, %v372
        %v390 = vmul.f32 %v374, %v374
        %v391 = vmul.f32 %v375, %v375
        %v392 = vmul.f32 %v376, %v376
        %v393 = vmul.f32 %v377, %v377
        %v394 = vmul.f32 %v378, %v378
        %v395 = vmul.f32 %v379, %v379
        %v396 = vmul.f32 %v380, %v380
        %v397 = vmul.f32 %v381, %v381
        %v398 = vmul.f32 %v382, %v382
        %v399 = vmul.f32 %v383, %v383
        %v400 = vmul.f32 %v384, %v384
        %v401 = vmul.f32 %v385, %v385
        %v402 = vmul.f32 %v386, %v386
        %v403 = vmul.f32 %v387, %v387
        %v404 = vmul.f32 %v388, %v388
        %v405 = vmul.f32 %v389, %v389
        %v406 = vsub.f32 0.0, %v390
        %v407 = vsub.f32 0.0, %v391
        %v408 = vsub.f32 0.0, %v392
        %v409 = vsub.f32 0.0, %v393
        %v410 = vsub.f32 0.0, %v394
        %v411 = vsub.f32 0.0, %v395
        %v412 = vsub.f32 0.0, %v396
        %v413 = vsub.f32 0.0, %v397
        %v414 = vsub.f32 0.0, %v398
        %v415 = vsub.f32 0.0, %v399
        %v416 = vsub.f32 0.0, %v400
        %v417 = vsub.f32 0.0, %v401
        %v418 = vsub.f32 0.0, %v402
        %v419 = vsub.f32 0.0, %v403
        %v420 = vsub.f32 0.0, %v404
        %v421 = vsub.f32 0.0, %v405
        %v422 = vmul.f32 %v406, 1.442695
        %v423 = vpow.pop %v422
        %v424 = vmul.f32 %v407, 1.442695
        %v425 = vpow.pop %v424
        %v426 = vmul.f32 %v408, 1.442695
        %v427 = vpow.pop %v426
        %v428 = vmul.f32 %v409, 1.442695
        %v429 = vpow.pop %v428
        %v430 = vmul.f32 %v410, 1.442695
        %v431 = vpow.pop %v430
        %v432 = vmul.f32 %v411, 1.442695
        %v433 = vpow.pop %v432
        %v434 = vmul.f32 %v412, 1.442695
        %v435 = vpow.pop %v434
        %v436 = vmul.f32 %v413, 1.442695
        %v437 = vpow.pop %v436
        %v438 = vmul.f32 %v414, 1.442695
        %v439 = vpow.pop %v438
        %v440 = vmul.f32 %v415, 1.442695
        %v441 = vpow.pop %v440
        %v442 = vmul.f32 %v416, 1.442695
        %v443 = vpow.pop %v442
        %v444 = vmul.f32 %v417, 1.442695
        %v445 = vpow.pop %v444
        %v446 = vmul.f32 %v418, 1.442695
        %v447 = vpow.pop %v446
        %v448 = vmul.f32 %v419, 1.442695
        %v449 = vpow.pop %v448
        %v450 = vmul.f32 %v420, 1.442695
        %v451 = vpow.pop %v450
        %v452 = vmul.f32 %v421, 1.442695
        %v453 = vpow.pop %v452
        %v454 = vld [vmem:[#allocation3] sm:$0x1]
        %v455 = vadd.f32 %v423, %v425
        %v456 = vadd.f32 %v455, %v427
        %v457 = vadd.f32 %v456, %v429
        %v458 = vadd.f32 %v457, %v431
        %v459 = vadd.f32 %v458, %v433
        %v460 = vadd.f32 %v459, %v435
        %v461 = vadd.f32 %v460, %v437
        %v462 = vadd.f32 %v461, %v439
        %v463 = vadd.f32 %v462, %v441
        %v464 = vadd.f32 %v463, %v443
        %v465 = vadd.f32 %v464, %v445
        %v466 = vadd.f32 %v465, %v447
        %v467 = vadd.f32 %v466, %v449
        %v468 = vadd.f32 %v467, %v451
        %v469 = vadd.f32 %v468, %v453
        %v470 = vrot.slane %v469, 4
        %v471 = vadd.f32 %v469, %v470
        %v472 = vrot.slane %v471, 2
        %v473 = vadd.f32 %v471, %v472
        %v474 = vrot.slane %v473, 1
        %v475 = vadd.f32 %v473, %v474
        %v476 = vadd.f32 %v454, %v475
        %477 = vst [vmem:[#allocation3] sm:$0x1] %v476
        %v478 = vld [vmem:[%s258] sm:$0xf]
        %v479 = vld [vmem:[#allocation2] sm:$0xff]
        %v480 = vpack.c.bf16 %v425, %v423
        %v481 = vpack.c.bf16 %v429, %v427
        %v482 = vpack.c.bf16 %v433, %v431
        %v483 = vpack.c.bf16 %v437, %v435
        %v484 = vpack.c.bf16 %v441, %v439
        %v485 = vpack.c.bf16 %v445, %v443
        %v486 = vpack.c.bf16 %v449, %v447
        %v487 = vpack.c.bf16 %v453, %v451
        %488 = vmatprep.subr.bf16.mxu0 0
        %489 = vmatpush1.bf16.msra.mxu0 %v487
        %490 = vmatprep.subr.bf16.mxu0 0
        %491 = vmatpush1.bf16.msra.mxu0 %v486
        %492 = vmatprep.subr.bf16.mxu0 0
        %493 = vmatpush1.bf16.msra.mxu0 %v485
        %494 = vmatprep.subr.bf16.mxu0 0
        %495 = vmatpush1.bf16.msra.mxu0 %v484
        %496 = vmatprep.subr.bf16.mxu0 0
        %497 = vmatpush1.bf16.msra.mxu0 %v483
        %498 = vmatprep.subr.bf16.mxu0 0
        %499 = vmatpush1.bf16.msra.mxu0 %v482
        %500 = vmatprep.subr.bf16.mxu0 0
        %501 = vmatpush1.bf16.msra.mxu0 %v481
        %502 = vmatprep.subr.bf16.mxu0 0
        %503 = vmatpush1.bf16.msra.mxu0 %v480
        %504 = vmatprep.subr.bf16.mxu0 0
        %505 = vmatpush2.bf16.msra.mxu0 0
        %506 = vmatprep.subr.bf16.mxu0 0
        %507 = vmatpush2.bf16.msra.mxu0 0
        %508 = vmatprep.subr.bf16.mxu0 0
        %509 = vmatpush2.bf16.msra.mxu0 0
        %510 = vmatprep.subr.bf16.mxu0 0
        %511 = vmatpush2.bf16.msra.mxu0 0
        %512 = vmatprep.subr.bf16.mxu0 0
        %513 = vmatpush2.bf16.msra.mxu0 0
        %514 = vmatprep.subr.bf16.mxu0 0
        %515 = vmatpush2.bf16.msra.mxu0 0
        %516 = vmatprep.subr.bf16.mxu0 0
        %517 = vmatpush2.bf16.msra.mxu0 0
        %518 = vmatprep.subr.bf16.mxu0 0
        %519 = vmatpush2.bf16.msra.mxu0 0
        %520 = vmatprep.mubr.bf16.mxu0 0
        %521 = vmatmul.mubr.bf16.gmra.mxu0 %v478
        %v522 = vpop.f32.mrf.mxu0
        %v523 = vadd.f32 0.0, %v522
        %v524 = vpop.f32.mrf.mxu0
        %v525 = vpop.f32.mrf.mxu0
        %v526 = vpop.f32.mrf.mxu0
        %527 = vdwg.mxu0
        %v528 = vadd.f32 %v479, %v523
        %529 = vst [vmem:[#allocation2] sm:$0xff] %v528
        // Predicated region
        $region37: #{tpu_custom_call.1} parent=31 // pred_check
          %p530 = pneg %p260
        $region38: #{tpu_custom_call.1} parent=31 // pred_check_branch
          %532 = sbr.rel (%p530) target = $region40
        $region39: #{tpu_custom_call.1} parent=31 // pred_region
          %v533 = vld [vmem:[#allocation3] sm:$0x1]
          %v534 = vmax.f32 %v533, 1e-30
          %v535 = vrcp.pop %v534
          %v536 = vld [vmem:[#allocation2] sm:$0xff]
          %v538 = vlaneseq
          %v539 = vshrl.u32 %v538, 7
          %v540 = vsub.s32 0, %v539
          %v541 = vrot.slane %v535, %v540
          %v543 = vmul.f32 %v536, %v541
          %544 = vst [vmem:[%s235] sm:$0xff] %v543
        $region40: #{tpu_custom_call.1} parent=31 // pred_fallthru
          _
        %s545 = sand.u32 %s130, 1
        %s546 = scalar_lea.sflag [#allocation5], %s545
        %s547 = sand.u32 %s130, 1
        %s548 = smul.addr %s547, 8
        %s549 = scalar_lea.vmem [#allocation4], %s548
        // Predicated region
        $region41: #{tpu_custom_call.1} parent=31 // pred_check
          %p550 = pneg %p140
        $region42: #{tpu_custom_call.1} parent=31 // pred_check_branch
          %552 = sbr.rel (%p550) target = $region44
        $region43: #{tpu_custom_call.1} parent=31 // pred_region
          %s554 = ssub.s32 128, 128
          %555 = vsyncadd %s546, %s554
          %s556 = sadd.s32 %s23, %s22
          %s557 = smul.addr %s556, 128
          %s558 = scalar_lea.hbm %s3, %s557
          %s560 = sshll.u32 %s549, 4
          %s561 = int_to_ptr.vmem [resolvable:$true] %s560
          %563 = dma.vmem_to_hbm [thread:$0]  %s561, 128, %s558, %s546
        $region44: #{tpu_custom_call.1} parent=31 // pred_fallthru
          _
      $region32: #{tpu_custom_call.1} parent=5 // pred_fallthru
        _
      %p564 = scmp.le.s32.totalorder 2, %s12
      // Predicated region
      $region45: #{tpu_custom_call.1} parent=5 // pred_check
        %p565 = pneg %p564
      $region46: #{tpu_custom_call.1} parent=5 // pred_check_branch
        %567 = sbr.rel (%p565) target = $region48
      $region47: #{tpu_custom_call.1} parent=5 // pred_region
        %s568 = ssub.s32 %s12, 2
        // Predicated region
        $region49: #{tpu_custom_call.1} parent=47 // pred_check
          %p569 = pneg %p146
        $region50: #{tpu_custom_call.1} parent=47 // pred_check_branch
          %571 = sbr.rel (%p569) target = $region52
        $region51: #{tpu_custom_call.1} parent=47 // pred_region
          %s572 = sand.u32 %s131, 1
          %s573 = scalar_lea.sflag [#allocation5], %s572
          %s574 = sand.u32 %s131, 1
          %s575 = smul.addr %s574, 8
          %s576 = scalar_lea.vmem [#allocation4], %s575
          %577 = dma.done %s573, 128
        $region52: #{tpu_custom_call.1} parent=47 // pred_fallthru
          _
      $region48: #{tpu_custom_call.1} parent=5 // pred_fallthru
        _
    $region6: #{tpu_custom_call.1} parent=1 // loop_footer
      %s16 = sadd.s32 1, %s12
    $region7: #{tpu_custom_call.1} parent=1 // loop_footer_branch
      %11 = sbr.rel target = $region3
    $region8: #{tpu_custom_call.1} parent=1 // loop_exit
      _
    %578 = vsyncpa [#allocation5], 1
    %s579 = scalar_lea.sflag [#allocation5], 1
    %580 = vsyncpa %s579, 1

</llo_original>
